<compile_context>
chip_gen: v5e
topology: v5e:2x2
jax: 0.10.0
libtpu: 0.0.40
codegen_flags: <defaults>
</compile_context>

<pallas_src>
import math

import jax
import jax.numpy as jnp
from jax.experimental import pallas as pl
from jax.experimental.pallas import tpu as pltpu


def _make_gconv_kernel(act: str):
    """act is static ('relu' or 'gelu'); only the chosen branch is traced."""

    def kernel(x_ref, a_ref, w_ref, b_ref, o_ref, h_ref):
        # Compute h = act(X[b] @ W + bias) once per batch element (row tile 0),
        # cache it in VMEM scratch and reuse it for every row tile of A[b].
        @pl.when(pl.program_id(1) == 0)
        def _():
            h = (jnp.dot(x_ref[0], w_ref[...],
                         preferred_element_type=jnp.float32) + b_ref[...])
            if act == "relu":
                h = jnp.maximum(h, 0.0)
            else:  # 'gelu' (erf form, matches the reference gelu)
                h = h * 0.5 * (1.0 + jax.lax.erf(h * (1.0 / math.sqrt(2.0))))
            h_ref[...] = h

        # out rows for this tile: A[b, tile, :] @ h
        out = jnp.dot(a_ref[0], h_ref[...], preferred_element_type=jnp.float32)
        o_ref[...] = out[None, :, :].astype(o_ref.dtype)

    return kernel


def gconv_forward(X, A, weight, bias, *, act="relu", row_tile=256):
    """GConv forward (attn=None branch).

    X:      (B, N, input_dim)   node features
    A:      (B, N, N)           adjacency
    weight: (output_dim, input_dim)   (PyTorch nn.Linear layout)
    bias:   (output_dim,)
    Returns (x, A) with x of shape (B, N, output_dim), like the module.
    """
    assert act in ("relu", "gelu")
    A_in = A
    B, Nn, Din = X.shape
    Dout = weight.shape[0]

    X = X.astype(jnp.float32)
    A = A.astype(jnp.float32)
    W = weight.astype(jnp.float32).T            # (Din, Dout) so kernel does x @ W
    b2 = bias.astype(jnp.float32).reshape(1, Dout)

    # Row tiling of the aggregation matmul (output node rows).
    if Nn <= row_tile:
        TM = Nn                                  # full-dim block (8,128 exception)
        Nn_pad = Nn
    else:
        TM = row_tile                            # multiple of 8
        Nn_pad = pl.cdiv(Nn, TM) * TM
    if Nn_pad != Nn:
        pad = Nn_pad - Nn
        X = jnp.pad(X, ((0, 0), (0, pad), (0, 0)))
        A = jnp.pad(A, ((0, 0), (0, pad), (0, pad)))

    grid = (B, Nn_pad // TM)

    flops = B * (2 * Nn_pad * Din * Dout + 2 * Nn_pad * Nn_pad * Dout)
    bytes_accessed = 4 * (B * Nn_pad * Din + B * Nn_pad * Nn_pad
                          + Din * Dout + Dout + B * Nn_pad * Dout)

    out = pl.pallas_call(
        _make_gconv_kernel(act),
        out_shape=jax.ShapeDtypeStruct((B, Nn_pad, Dout), jnp.float32),
        grid=grid,
        in_specs=[
            # X[b] : constant across the row-tile axis -> fetched once per b
            pl.BlockSpec((1, Nn_pad, Din), lambda bb, i: (bb, 0, 0)),
            # A[b, tile, :]
            pl.BlockSpec((1, TM, Nn_pad), lambda bb, i: (bb, i, 0)),
            # weights / bias stay VMEM-resident (constant block index)
            pl.BlockSpec((Din, Dout), lambda bb, i: (0, 0)),
            pl.BlockSpec((1, Dout), lambda bb, i: (0, 0)),
        ],
        out_specs=pl.BlockSpec((1, TM, Dout), lambda bb, i: (bb, i, 0)),
        scratch_shapes=[pltpu.VMEM((Nn_pad, Dout), jnp.float32)],
        compiler_params=pltpu.CompilerParams(
            dimension_semantics=("parallel", "arbitrary")),
        cost_estimate=pl.CostEstimate(
            flops=flops, transcendentals=0, bytes_accessed=bytes_accessed),
    )(X, A, W, b2)

    if Nn_pad != Nn:
        out = out[:, :Nn, :]
    return out, A_in


def reference_forward(X, A, weight, bias, act="relu"):
    h = jnp.einsum("bnd,od->bno", X, weight) + bias
    if act == "relu":
        h = jnp.maximum(h, 0.0)
    else:
        h = h * 0.5 * (1.0 + jax.lax.erf(h / math.sqrt(2.0)))
    return jnp.matmul(A, h), A


if __name__ == "__main__":
    # Small shapes consistent with the module: batch=2, nodes=16,
    # input_dim=16, output_dim=32, act=relu (module default).
    B, Nn = 2, 16
    input_dim, output_dim = 16, 32

    key = jax.random.PRNGKey(0)
    kx, ka, kw, kb = jax.random.split(key, 4)

    X = jax.random.normal(kx, (B, Nn, input_dim), jnp.float32)

    # Adjacency: random edges + self loops, row-normalized.
    adj = (jax.random.uniform(ka, (B, Nn, Nn)) < 0.4).astype(jnp.float32)
    adj = adj + jnp.eye(Nn, dtype=jnp.float32)[None]
    A = adj / jnp.sum(adj, axis=-1, keepdims=True)

    # nn.Linear(input_dim, output_dim): xavier_normal_ weight, default bias init.
    std = math.sqrt(2.0 / (input_dim + output_dim))
    weight = std * jax.random.normal(kw, (output_dim, input_dim), jnp.float32)
    bound = 1.0 / math.sqrt(input_dim)
    bias = jax.random.uniform(kb, (output_dim,), jnp.float32, -bound, bound)

    out, A_out = gconv_forward(X, A, weight, bias, act="relu")
    out = jax.block_until_ready(out)

    ref, _ = reference_forward(X, A, weight, bias, act="relu")
    assert out.shape == (B, Nn, output_dim), out.shape
    assert A_out.shape == A.shape
    max_err = float(jnp.max(jnp.abs(out - ref)))
    assert jnp.allclose(out, ref, atol=1e-3, rtol=1e-3), max_err

    print("KERNEL_OK")
</pallas_src>

<mosaic_0001>
module attributes {stable_mosaic.version = 11 : i64} {
  func.func @kernel(%arg0: i32, %arg1: i32, %arg2: memref<1x16x16xf32, #tpu.memory_space<vmem>>, %arg3: memref<1x16x16xf32, #tpu.memory_space<vmem>>, %arg4: memref<16x32xf32, #tpu.memory_space<vmem>>, %arg5: memref<1x32xf32, #tpu.memory_space<vmem>>, %arg6: memref<1x16x32xf32, #tpu.memory_space<vmem>>, %arg7: memref<16x32xf32, #tpu.memory_space<vmem>>) attributes {dimension_semantics = [#tpu.dimension_semantics<parallel>, #tpu.dimension_semantics<arbitrary>], iteration_bounds = array<i64: 2, 1>, scalar_prefetch = 0 : i64, scratch_operands = 1 : i64, tpu.core_type = #tpu.core_type<tc>, window_params = [{transform_indices = @transform_0, window_bounds = array<i64: 1, 16, 16>}, {transform_indices = @transform_1, window_bounds = array<i64: 1, 16, 16>}, {pipeline_mode = #tpu.pipeline_mode<synchronous>, transform_indices = @transform_2, window_bounds = array<i64: 16, 32>}, {pipeline_mode = #tpu.pipeline_mode<synchronous>, transform_indices = @transform_3, window_bounds = array<i64: 1, 32>}, {transform_indices = @transform_4, window_bounds = array<i64: 1, 16, 32>}]} {
    %c0_i32 = arith.constant 0 : i32
    %0 = arith.cmpi eq, %arg1, %c0_i32 : i32
    %1 = arith.extui %0 : i1 to i32
    %c0_i32_0 = arith.constant 0 : i32
    %2 = arith.cmpi ne, %1, %c0_i32_0 : i32
    scf.if %2 {
      %c0_8 = arith.constant 0 : index
      %c0_9 = arith.constant 0 : index
      %c0_10 = arith.constant 0 : index
      %9 = vector.load %arg2[%c0_8, %c0_9, %c0_10] : memref<1x16x16xf32, #tpu.memory_space<vmem>>, vector<1x16x16xf32>
      %10 = vector.shape_cast %9 : vector<1x16x16xf32> to vector<16x16xf32>
      %c0_11 = arith.constant 0 : index
      %c0_12 = arith.constant 0 : index
      %11 = vector.load %arg4[%c0_11, %c0_12] : memref<16x32xf32, #tpu.memory_space<vmem>>, vector<16x32xf32>
      %cst_13 = arith.constant dense<0.000000e+00> : vector<16x32xf32>
      %12 = tpu.matmul %10, %11, %cst_13 {dimension_numbers = #tpu.dot_dimension_numbers<[1], [0], [0], [1], [0, 0, 1, 1], [], []>} : vector<16x16xf32>, vector<16x32xf32>, vector<16x32xf32> -> vector<16x32xf32>
      %c0_14 = arith.constant 0 : index
      %c0_15 = arith.constant 0 : index
      %13 = vector.load %arg5[%c0_14, %c0_15] : memref<1x32xf32, #tpu.memory_space<vmem>>, vector<1x32xf32>
      %14 = vector.broadcast %13 : vector<1x32xf32> to vector<16x32xf32>
      %15 = arith.addf %12, %14 : vector<16x32xf32>
      %cst_16 = arith.constant 0.000000e+00 : f32
      %16 = vector.broadcast %cst_16 : f32 to vector<16x32xf32>
      %17 = arith.maximumf %15, %16 : vector<16x32xf32>
      %c0_17 = arith.constant 0 : index
      %c0_18 = arith.constant 0 : index
      %18 = vector.load %arg7[%c0_17, %c0_18] : memref<16x32xf32, #tpu.memory_space<vmem>>, vector<16x32xf32>
      tpu.vector_store %arg7[%c0_17, %c0_18], %17 {strides = array<i32>} : memref<16x32xf32, #tpu.memory_space<vmem>>, vector<16x32xf32>,
    } else {
    }
    %c0 = arith.constant 0 : index
    %c0_1 = arith.constant 0 : index
    %c0_2 = arith.constant 0 : index
    %3 = vector.load %arg3[%c0, %c0_1, %c0_2] : memref<1x16x16xf32, #tpu.memory_space<vmem>>, vector<1x16x16xf32>
    %4 = vector.shape_cast %3 : vector<1x16x16xf32> to vector<16x16xf32>
    %c0_3 = arith.constant 0 : index
    %c0_4 = arith.constant 0 : index
    %5 = vector.load %arg7[%c0_3, %c0_4] : memref<16x32xf32, #tpu.memory_space<vmem>>, vector<16x32xf32>
    %cst = arith.constant dense<0.000000e+00> : vector<16x32xf32>
    %6 = tpu.matmul %4, %5, %cst {dimension_numbers = #tpu.dot_dimension_numbers<[1], [0], [0], [1], [0, 0, 1, 1], [], []>} : vector<16x16xf32>, vector<16x32xf32>, vector<16x32xf32> -> vector<16x32xf32>
    %7 = vector.shape_cast %6 : vector<16x32xf32> to vector<1x16x32xf32>
    %c0_5 = arith.constant 0 : index
    %c0_6 = arith.constant 0 : index
    %c0_7 = arith.constant 0 : index
    %8 = vector.load %arg6[%c0_5, %c0_6, %c0_7] : memref<1x16x32xf32, #tpu.memory_space<vmem>>, vector<1x16x32xf32>
    tpu.vector_store %arg6[%c0_5, %c0_6, %c0_7], %7 {strides = array<i32>} : memref<1x16x32xf32, #tpu.memory_space<vmem>>, vector<1x16x32xf32>,
    return
  }
  func.func @transform_0(%arg0: i32, %arg1: i32) -> (i32, i32, i32) {
    %c0_i32 = arith.constant 0 : i32
    %c0_i32_0 = arith.constant 0 : i32
    %c0_i32_1 = arith.constant 0 : i32
    return %arg0, %c0_i32, %c0_i32_0 : i32, i32, i32
  }
  func.func @transform_1(%arg0: i32, %arg1: i32) -> (i32, i32, i32) {
    %c0_i32 = arith.constant 0 : i32
    %c0_i32_0 = arith.constant 0 : i32
    return %arg0, %arg1, %c0_i32 : i32, i32, i32
  }
  func.func @transform_2(%arg0: i32, %arg1: i32) -> (i32, i32) {
    %c0_i32 = arith.constant 0 : i32
    %c0_i32_0 = arith.constant 0 : i32
    %c0_i32_1 = arith.constant 0 : i32
    return %c0_i32, %c0_i32_0 : i32, i32
  }
  func.func @transform_3(%arg0: i32, %arg1: i32) -> (i32, i32) {
    %c0_i32 = arith.constant 0 : i32
    %c0_i32_0 = arith.constant 0 : i32
    %c0_i32_1 = arith.constant 0 : i32
    return %c0_i32, %c0_i32_0 : i32, i32
  }
  func.func @transform_4(%arg0: i32, %arg1: i32) -> (i32, i32, i32) {
    %c0_i32 = arith.constant 0 : i32
    %c0_i32_0 = arith.constant 0 : i32
    return %arg0, %arg1, %c0_i32 : i32, i32, i32
  }
}

</mosaic_0001>

<llo_original>
// kernel: tpu_custom_call.1
$region0: #{tpu_custom_call.1}
  #allocation0 [shape = 'u32[]', space=smem, size = 0x4, offset = 0x4, fixed_abs, tag = 'smem constant byte address 0x4 - core index']
  #allocation1 [shape = 'u32[72,128]{1,0:T(1,128)}', space=vmem, size = 0x9000, scoped, tag = 'internal scratch']
  #allocation2 [shape = 'f32[16,32]{1,0:T(8,128)}', space=vmem, size = 0x2000, scoped, tag = 'scratch operand']
  %s0 = inlined_call_operand.hbm [shape: f32[2,16,16], index: 0, kind: input, shape index: {}]
  %s1 = inlined_call_operand.hbm [shape: f32[2,16,16], index: 1, kind: input, shape index: {}]
  %s2 = inlined_call_operand.hbm [shape: f32[16,32], index: 2, kind: input, shape index: {}]
  %s3 = inlined_call_operand.vmem [shape: f32[1,32], index: 3, kind: input, shape index: {}]
  %s4 = inlined_call_operand.hbm [shape: f32[2,16,32], index: 4, kind: output, shape index: {}]
  %s5 = sld [smem:[#allocation0]]
  $region65: #{tpu_custom_call.1} parent=0
    _
  %s7 = ssub.s32 1, %s5
  %s8 = scalar_select 0, %s7, %s5
  $region1: #{tpu_custom_call.1} parent=0
    #allocation3 [shape = 'u8[16384]{0}', space=vmem, size = 0x4000, scoped, tag = 'input window, operand 0']
    #allocation4 [shape = 's32[2]{0}', space=sflag, size = 0x8, scoped, tag = 'scoped memory for tpu_custom_call.1']
    #allocation5 [shape = 's32[2]{0}', space=sflag, size = 0x8, scoped, tag = 'scoped memory for tpu_custom_call.1']
    #allocation6 [shape = 'u8[16384]{0}', space=vmem, size = 0x4000, scoped, tag = 'input window, operand 1']
    #allocation7 [shape = 's32[2]{0}', space=sflag, size = 0x8, scoped, tag = 'scoped memory for tpu_custom_call.1']
    #allocation8 [shape = 'u8[8192]{0}', space=vmem, size = 0x2000, scoped, tag = 'input window, operand 2, single buffered']
    #allocation9 [shape = 'u8[16384]{0}', space=vmem, size = 0x4000, scoped, tag = 'output window, operand 0']
    %9 = vsyncpa [#allocation4], 0
    %s10 = scalar_lea.sflag [#allocation4], 1
    %11 = vsyncpa %s10, 0
    %12 = vsyncpa [#allocation7], 0
    %s13 = scalar_lea.sflag [#allocation7], 1
    %14 = vsyncpa %s13, 0
    %15 = vsyncpa [#allocation5], 0
    %s16 = scalar_lea.sflag [#allocation5], 1
    %17 = vsyncpa %s16, 0
    loop: start=0, step=1, limit=4
    $region2: #{tpu_custom_call.1} parent=1 // loop_pre_header
      _
    $region3: #{tpu_custom_call.1} parent=1 // loop_header
      %s19 = sphi 0, %s23
      %p20 = scmp.ge.s32.totalorder %s19, 4
      %s26 = sphi 0, %s38
      %s27 = sphi 0, %s34
      %s28 = sphi 0, %s26
      %s29 = sphi 0, %s27
      %s30 = sphi 0, %s28
      %s31 = sphi 0, %s29
      %s41 = sphi 0, %s43
      %s44 = sphi 0, %s41
      %s45 = sphi 0, %s44
      %s61 = sphi 0, %s45
      %s69 = sphi 0, %s71
      %s72 = sphi 0, %s69
      %s73 = sphi 0, %s72
      %s89 = sphi 0, %s73
      %s93 = sphi 0, %s93
      %s95 = sphi 0, %s93
      %s96 = sphi 0, %s95
      %s110 = sphi 0, %s96
      %s114 = sphi 0, %s114
      %s116 = sphi 0, %s114
      %s117 = sphi 0, %s116
      %s131 = sphi 0, %s117
      %s139 = sphi 0, %s141
      %s142 = sphi 0, %s139
      %s143 = sphi 0, %s142
      %s159 = sphi 0, %s143
    $region4: #{tpu_custom_call.1} parent=1 // loop_header_branch
      %22 = sbr.rel (%p20) target = $region8
    $region5: #{tpu_custom_call.1} parent=1 // loop_body
      %s24 = ssub.s32 %s19, 1
      %s25 = ssub.s32 %s19, 2
      %s32 = sadd.s32 1, %s27
      %p33 = scmp.ge.s32.totalorder %s32, 1
      %s34 = scalar_select %p33, 0, %s32
      %s35 = sadd.s32 1, %s26
      %s36 = scalar_select %p33, %s35, %s26
      %p37 = scmp.ge.s32.totalorder %s36, 2
      %s38 = scalar_select %p37, 0, %s36
      %s39 = ssub.s32 %s26, %s38
      %p40 = scmp.eq.s32.totalorder %s39, 0
      %s42 = sadd.s32 %s41, 1
      %s43 = scalar_select %p40, %s41, %s42
      %p46 = pneg %p40
      %p47 = scmp.eq.s32.totalorder %s19, 1
      %p48 = por %p46, %p47
      %p49 = scmp.ne.s32.totalorder %s41, %s44
      %p50 = scmp.eq.s32.totalorder %s19, 0
      %p51 = por %p49, %p50
      %p52 = scmp.ne.s32.totalorder %s41, %s44
      %p53 = scmp.eq.s32.totalorder %s24, 1
      %p54 = por %p52, %p53
      %p55 = scmp.ne.s32.totalorder %s44, %s45
      %p56 = scmp.eq.s32.totalorder %s24, 0
      %p57 = por %p55, %p56
      %p58 = scmp.ne.s32.totalorder %s44, %s45
      %p59 = scmp.eq.s32.totalorder %s25, 1
      %p60 = por %p58, %p59
      %p62 = scmp.ne.s32.totalorder %s45, %s61
      %p63 = scmp.eq.s32.totalorder %s25, 0
      %p64 = por %p62, %p63
      %s65 = ssub.s32 %s26, %s38
      %s66 = ssub.s32 %s27, %s34
      %s67 = sor.u32 %s65, %s66
      %p68 = scmp.eq.s32.totalorder %s67, 0
      %s70 = sadd.s32 %s69, 1
      %s71 = scalar_select %p68, %s69, %s70
      %p74 = pneg %p68
      %p75 = scmp.eq.s32.totalorder %s19, 1
      %p76 = por %p74, %p75
      %p77 = scmp.ne.s32.totalorder %s69, %s72
      %p78 = scmp.eq.s32.totalorder %s19, 0
      %p79 = por %p77, %p78
      %p80 = scmp.ne.s32.totalorder %s69, %s72
      %p81 = scmp.eq.s32.totalorder %s24, 1
      %p82 = por %p80, %p81
      %p83 = scmp.ne.s32.totalorder %s72, %s73
      %p84 = scmp.eq.s32.totalorder %s24, 0
      %p85 = por %p83, %p84
      %p86 = scmp.ne.s32.totalorder %s72, %s73
      %p87 = scmp.eq.s32.totalorder %s25, 1
      %p88 = por %p86, %p87
      %p90 = scmp.ne.s32.totalorder %s73, %s89
      %p91 = scmp.eq.s32.totalorder %s25, 0
      %p92 = por %p90, %p91
      %s94 = sadd.s32 %s93, 1
      %p97 = scmp.eq.s32.totalorder %s19, 1
      %p98 = scmp.ne.s32.totalorder %s93, %s95
      %p99 = scmp.eq.s32.totalorder %s19, 0
      %p100 = por %p98, %p99
      %p101 = scmp.ne.s32.totalorder %s93, %s95
      %p102 = scmp.eq.s32.totalorder %s24, 1
      %p103 = por %p101, %p102
      %p104 = scmp.ne.s32.totalorder %s95, %s96
      %p105 = scmp.eq.s32.totalorder %s24, 0
      %p106 = por %p104, %p105
      %p107 = scmp.ne.s32.totalorder %s95, %s96
      %p108 = scmp.eq.s32.totalorder %s25, 1
      %p109 = por %p107, %p108
      %p111 = scmp.ne.s32.totalorder %s96, %s110
      %p112 = scmp.eq.s32.totalorder %s25, 0
      %p113 = por %p111, %p112
      %s115 = sadd.s32 %s114, 1
      %p118 = scmp.eq.s32.totalorder %s19, 1
      %p119 = scmp.ne.s32.totalorder %s114, %s116
      %p120 = scmp.eq.s32.totalorder %s19, 0
      %p121 = por %p119, %p120
      %p122 = scmp.ne.s32.totalorder %s114, %s116
      %p123 = scmp.eq.s32.totalorder %s24, 1
      %p124 = por %p122, %p123
      %p125 = scmp.ne.s32.totalorder %s116, %s117
      %p126 = scmp.eq.s32.totalorder %s24, 0
      %p127 = por %p125, %p126
      %p128 = scmp.ne.s32.totalorder %s116, %s117
      %p129 = scmp.eq.s32.totalorder %s25, 1
      %p130 = por %p128, %p129
      %p132 = scmp.ne.s32.totalorder %s117, %s131
      %p133 = scmp.eq.s32.totalorder %s25, 0
      %p134 = por %p132, %p133
      %s135 = ssub.s32 %s26, %s38
      %s136 = ssub.s32 %s27, %s34
      %s137 = sor.u32 %s135, %s136
      %p138 = scmp.eq.s32.totalorder %s137, 0
      %s140 = sadd.s32 %s139, 1
      %s141 = scalar_select %p138, %s139, %s140
      %p144 = pneg %p138
      %p145 = scmp.eq.s32.totalorder %s19, 1
      %p146 = por %p144, %p145
      %p147 = scmp.ne.s32.totalorder %s139, %s142
      %p148 = scmp.eq.s32.totalorder %s19, 0
      %p149 = por %p147, %p148
      %p150 = scmp.ne.s32.totalorder %s139, %s142
      %p151 = scmp.eq.s32.totalorder %s24, 1
      %p152 = por %p150, %p151
      %p153 = scmp.ne.s32.totalorder %s142, %s143
      %p154 = scmp.eq.s32.totalorder %s24, 0
      %p155 = por %p153, %p154
      %p156 = scmp.ne.s32.totalorder %s142, %s143
      %p157 = scmp.eq.s32.totalorder %s25, 1
      %p158 = por %p156, %p157
      %p160 = scmp.ne.s32.totalorder %s143, %s159
      %p161 = scmp.eq.s32.totalorder %s25, 0
      %p162 = por %p160, %p161
      %p163 = scmp.le.s32.totalorder 1, %s19
      %p164 = scmp.lt.s32.totalorder %s19, 3
      %p165 = pnand %p163, %p164
      %p166 = pneg %p165
      // Predicated region
      $region9: #{tpu_custom_call.1} parent=5 // pred_check
        _
      $region10: #{tpu_custom_call.1} parent=5 // pred_check_branch
        %168 = sbr.rel (%p165) target = $region12
      $region11: #{tpu_custom_call.1} parent=5 // pred_region
        %s169 = ssub.s32 %s19, 1
        // Predicated region
        $region13: #{tpu_custom_call.1} parent=11 // pred_check
          %p170 = pneg %p106
        $region14: #{tpu_custom_call.1} parent=11 // pred_check_branch
          %172 = sbr.rel (%p170) target = $region16
        $region15: #{tpu_custom_call.1} parent=11 // pred_region
          %174 = vsyncadd [#allocation7], 0
          %s175 = sshll.u32 %s2, 4
          %s176 = int_to_ptr.hbm [resolvable:$true] %s175
          %s177 = sshll.u32 [#allocation8], 4
          %s178 = int_to_ptr.vmem [resolvable:$true] %s177
          %183 = dma.hbm_to_vmem [thread:$0]  %s176, 256, %s178, [#allocation7], 128, 128, 8
        $region16: #{tpu_custom_call.1} parent=11 // pred_fallthru
          _
        // Predicated region
        $region17: #{tpu_custom_call.1} parent=11 // pred_check
          %p184 = pneg %p127
        $region18: #{tpu_custom_call.1} parent=11 // pred_check_branch
          %186 = sbr.rel (%p184) target = $region20
        $region19: #{tpu_custom_call.1} parent=11 // pred_region
          _
        $region20: #{tpu_custom_call.1} parent=11 // pred_fallthru
          _
      $region12: #{tpu_custom_call.1} parent=5 // pred_fallthru
        _
      %p187 = scmp.lt.s32.totalorder %s19, 2
      // Predicated region
      $region21: #{tpu_custom_call.1} parent=5 // pred_check
        %p188 = pneg %p187
      $region22: #{tpu_custom_call.1} parent=5 // pred_check_branch
        %190 = sbr.rel (%p188) target = $region24
      $region23: #{tpu_custom_call.1} parent=5 // pred_region
        // Predicated region
        $region25: #{tpu_custom_call.1} parent=23 // pred_check
          %p191 = pneg %p51
        $region26: #{tpu_custom_call.1} parent=23 // pred_check_branch
          %193 = sbr.rel (%p191) target = $region28
        $region27: #{tpu_custom_call.1} parent=23 // pred_region
          %s194 = sand.u32 %s41, 1
          %s195 = scalar_lea.sflag [#allocation4], %s194
          %s196 = sand.u32 %s41, 1
          %s197 = smul.addr %s196, 16
          %s198 = scalar_lea.vmem [#allocation3], %s197
          %200 = vsyncadd %s195, 0
          %s201 = smul.addr %s26, 2
          %s202 = smul.addr %s201, 8
          %s203 = scalar_lea.hbm %s0, %s202
          %s204 = sshll.u32 %s203, 4
          %s205 = int_to_ptr.hbm [resolvable:$true] %s204
          %s206 = sshll.u32 %s198, 4
          %s207 = int_to_ptr.vmem [resolvable:$true] %s206
          %212 = dma.hbm_to_vmem [thread:$0]  %s205, 256, %s207, %s195, 128, 128, 8
        $region28: #{tpu_custom_call.1} parent=23 // pred_fallthru
          _
        // Predicated region
        $region29: #{tpu_custom_call.1} parent=23 // pred_check
          %p213 = pneg %p79
        $region30: #{tpu_custom_call.1} parent=23 // pred_check_branch
          %215 = sbr.rel (%p213) target = $region32
        $region31: #{tpu_custom_call.1} parent=23 // pred_region
          %s216 = sand.u32 %s19, 1
          %s217 = scalar_lea.sflag [#allocation7], %s216
          %s218 = sand.u32 %s69, 1
          %s219 = smul.addr %s218, 16
          %s220 = scalar_lea.vmem [#allocation6], %s219
          %s221 = smul.u32 2, %s27
          %223 = vsyncadd %s217, 0
          %s224 = smul.addr %s26, 2
          %s225 = sadd.s32 %s221, %s224
          %s226 = smul.addr %s225, 8
          %s227 = scalar_lea.hbm %s1, %s226
          %s228 = sshll.u32 %s227, 4
          %s229 = int_to_ptr.hbm [resolvable:$true] %s228
          %s230 = sshll.u32 %s220, 4
          %s231 = int_to_ptr.vmem [resolvable:$true] %s230
          %236 = dma.hbm_to_vmem [thread:$0]  %s229, 256, %s231, %s217, 128, 128, 8
        $region32: #{tpu_custom_call.1} parent=23 // pred_fallthru
          _
      $region24: #{tpu_custom_call.1} parent=5 // pred_fallthru
        _
      %p237 = scmp.le.s32.totalorder 1, %s19
      %p238 = scmp.lt.s32.totalorder %s19, 3
      %p239 = pnand %p237, %p238
      %p240 = pneg %p239
      // Predicated region
      $region33: #{tpu_custom_call.1} parent=5 // pred_check
        _
      $region34: #{tpu_custom_call.1} parent=5 // pred_check_branch
        %242 = sbr.rel (%p239) target = $region36
      $region35: #{tpu_custom_call.1} parent=5 // pred_region
        %s243 = ssub.s32 %s19, 1
        %s244 = sand.u32 %s44, 1
        %s245 = scalar_lea.sflag [#allocation4], %s244
        %s246 = sand.u32 %s44, 1
        %s247 = smul.addr %s246, 16
        %s248 = scalar_lea.vmem [#allocation3], %s247
        // Predicated region
        $region37: #{tpu_custom_call.1} parent=35 // pred_check
          %p249 = pneg %p57
        $region38: #{tpu_custom_call.1} parent=35 // pred_check_branch
          %251 = sbr.rel (%p249) target = $region40
        $region39: #{tpu_custom_call.1} parent=35 // pred_region
          %253 = dma.done %s245, 256
        $region40: #{tpu_custom_call.1} parent=35 // pred_fallthru
          _
        %s254 = sand.u32 %s24, 1
        %s255 = scalar_lea.sflag [#allocation7], %s254
        %s256 = sand.u32 %s72, 1
        %s257 = smul.addr %s256, 16
        %s258 = scalar_lea.vmem [#allocation6], %s257
        // Predicated region
        $region41: #{tpu_custom_call.1} parent=35 // pred_check
          %p259 = pneg %p85
        $region42: #{tpu_custom_call.1} parent=35 // pred_check_branch
          %261 = sbr.rel (%p259) target = $region44
        $region43: #{tpu_custom_call.1} parent=35 // pred_region
          %263 = dma.done %s255, 256
        $region44: #{tpu_custom_call.1} parent=35 // pred_fallthru
          _
        // Predicated region
        $region45: #{tpu_custom_call.1} parent=35 // pred_check
          %p264 = pneg %p106
        $region46: #{tpu_custom_call.1} parent=35 // pred_check_branch
          %266 = sbr.rel (%p264) target = $region48
        $region47: #{tpu_custom_call.1} parent=35 // pred_region
          %268 = dma.done [#allocation7], 256
        $region48: #{tpu_custom_call.1} parent=35 // pred_fallthru
          _
        %s269 = sand.u32 %s44, 1
        %s270 = scalar_lea.sflag [#allocation4], %s269
        %s271 = sand.u32 %s44, 1
        %s272 = smul.addr %s271, 16
        %s273 = scalar_lea.vmem [#allocation3], %s272
        %p274 = pneg %p57
        %p275 = pneg %p54
        %s276 = sand.u32 %s24, 1
        %s277 = scalar_lea.sflag [#allocation7], %s276
        %s278 = sand.u32 %s72, 1
        %s279 = smul.addr %s278, 16
        %s280 = scalar_lea.vmem [#allocation6], %s279
        %p281 = pneg %p85
        %p282 = pneg %p82
        %p283 = pneg %p106
        %p284 = pneg %p103
        %p285 = pneg %p127
        %p286 = pneg %p124
        %p287 = pneg %p155
        %p288 = pneg %p152
        %s289 = sand.u32 %s142, 1
        %s290 = scalar_lea.sflag [#allocation5], %s289
        %s291 = sand.u32 %s142, 1
        %s292 = smul.addr %s291, 16
        %s293 = scalar_lea.vmem [#allocation9], %s292
        %s294 = smul.u32 2, %s29
        %s295 = smul.u32 2, %s29
        %p296 = scmp.eq.s32.totalorder %s29, 0
        // Predicated region
        $region49: #{tpu_custom_call.1} parent=35 // pred_check
          %p297 = pneg %p296
        $region50: #{tpu_custom_call.1} parent=35 // pred_check_branch
          %299 = sbr.rel (%p297) target = $region52
        $region51: #{tpu_custom_call.1} parent=35 // pred_region
          %v300 = vld [vmem:[%s248] sm:$0xff]
          %v301 = vld [vmem:[%s248 + $0x8] sm:$0xff]
          %v302 = vld [vmem:[#allocation8] sm:$0xff]
          %v303 = vld [vmem:[#allocation8 + $0x8] sm:$0xff]
          %v304 = vld [vmem:[%s3] sm:$0x1]
          %v306 = vperm.slane %v304, 0
          %vm308 = vcmask 130048
          %v310 = vsel %vm308, %v300, 0
          %v313 = vsel %vm308, %v301, 0
          %315 = vmatpush.msra.mxu0 0.0
          %316 = vmatpush.msra.mxu0 0.0
          %317 = vmatpush.msra.mxu0 0.0
          %318 = vmatpush.msra.mxu0 0.0
          %319 = vmatpush.msra.mxu0 0.0
          %320 = vmatpush.msra.mxu0 0.0
          %321 = vmatpush.msra.mxu0 0.0
          %322 = vmatpush.msra.mxu0 0.0
          %323 = vmatpush.msra.mxu0 0.0
          %324 = vmatpush.msra.mxu0 0.0
          %325 = vmatpush.msra.mxu0 0.0
          %326 = vmatpush.msra.mxu0 0.0
          %327 = vmatpush.msra.mxu0 0.0
          %328 = vmatpush.msra.mxu0 0.0
          %329 = vmatpush.msra.mxu0 %v303
          %330 = vmatpush.msra.mxu0 %v302
          %331 = vmatmul.f32.gmra.mxu0 %v310
          %v332 = vpop.f32.mrf.mxu0
          %v333 = vadd.f32 %v306, %v332
          %334 = vmatmul.f32.gmra.mxu0 %v313
          %v335 = vpop.f32.mrf.mxu0
          %v336 = vadd.f32 %v306, %v335
          %337 = vdwg.mxu0
          %v338 = vmax.f32 %v333, 0.0
          %v339 = vmax.f32 %v336, 0.0
          %vm340 = vcmask 261120
          %341 = vst.msk [vmem:[#allocation2] sm:$0xff] %vm340, %v338
          %342 = vst.msk [vmem:[#allocation2 + $0x8] sm:$0xff] %vm340, %v339
        $region52: #{tpu_custom_call.1} parent=35 // pred_fallthru
          _
        %v343 = vld [vmem:[%s258] sm:$0xff]
        %v344 = vld [vmem:[%s258 + $0x8] sm:$0xff]
        %v345 = vld [vmem:[#allocation2] sm:$0xff]
        %v346 = vld [vmem:[#allocation2 + $0x8] sm:$0xff]
        %vm347 = vcmask 130048
        %v349 = vsel %vm347, %v343, 0
        %v352 = vsel %vm347, %v344, 0
        %354 = vmatpush.msra.mxu0 0.0
        %355 = vmatpush.msra.mxu0 0.0
        %356 = vmatpush.msra.mxu0 0.0
        %357 = vmatpush.msra.mxu0 0.0
        %358 = vmatpush.msra.mxu0 0.0
        %359 = vmatpush.msra.mxu0 0.0
        %360 = vmatpush.msra.mxu0 0.0
        %361 = vmatpush.msra.mxu0 0.0
        %362 = vmatpush.msra.mxu0 0.0
        %363 = vmatpush.msra.mxu0 0.0
        %364 = vmatpush.msra.mxu0 0.0
        %365 = vmatpush.msra.mxu0 0.0
        %366 = vmatpush.msra.mxu0 0.0
        %367 = vmatpush.msra.mxu0 0.0
        %368 = vmatpush.msra.mxu0 %v346
        %369 = vmatpush.msra.mxu0 %v345
        %370 = vmatmul.f32.gmra.mxu0 %v349
        %v371 = vpop.f32.mrf.mxu0
        %v372 = vadd.f32 0.0, %v371
        %373 = vmatmul.f32.gmra.mxu0 %v352
        %v374 = vpop.f32.mrf.mxu0
        %v375 = vadd.f32 0.0, %v374
        %376 = vdwg.mxu0
        %vm377 = vcmask 261120
        %378 = vst.msk [vmem:[%s293] sm:$0xff] %vm377, %v372
        %379 = vst.msk [vmem:[%s293 + $0x8] sm:$0xff] %vm377, %v375
        %s380 = sand.u32 %s142, 1
        %s381 = scalar_lea.sflag [#allocation5], %s380
        %s382 = sand.u32 %s142, 1
        %s383 = smul.addr %s382, 16
        %s384 = scalar_lea.vmem [#allocation9], %s383
        // Predicated region
        $region53: #{tpu_custom_call.1} parent=35 // pred_check
          %p385 = pneg %p152
        $region54: #{tpu_custom_call.1} parent=35 // pred_check_branch
          %387 = sbr.rel (%p385) target = $region56
        $region55: #{tpu_custom_call.1} parent=35 // pred_region
          %s388 = smul.u32 2, %s29
          %390 = vsyncadd %s381, 0
          %s391 = smul.addr %s28, 2
          %s392 = sadd.s32 %s388, %s391
          %s393 = smul.addr %s392, 8
          %s394 = scalar_lea.hbm %s4, %s393
          %s395 = sshll.u32 %s384, 4
          %s396 = int_to_ptr.vmem [resolvable:$true] %s395
          %s397 = sshll.u32 %s394, 4
          %s398 = int_to_ptr.hbm [resolvable:$true] %s397
          %403 = dma.vmem_to_hbm [thread:$0]  %s396, 256, %s398, %s381, 128, 128, 8
        $region56: #{tpu_custom_call.1} parent=35 // pred_fallthru
          _
      $region36: #{tpu_custom_call.1} parent=5 // pred_fallthru
        _
      %p404 = scmp.le.s32.totalorder 2, %s19
      // Predicated region
      $region57: #{tpu_custom_call.1} parent=5 // pred_check
        %p405 = pneg %p404
      $region58: #{tpu_custom_call.1} parent=5 // pred_check_branch
        %407 = sbr.rel (%p405) target = $region60
      $region59: #{tpu_custom_call.1} parent=5 // pred_region
        %s408 = ssub.s32 %s19, 2
        // Predicated region
        $region61: #{tpu_custom_call.1} parent=59 // pred_check
          %p409 = pneg %p158
        $region62: #{tpu_custom_call.1} parent=59 // pred_check_branch
          %411 = sbr.rel (%p409) target = $region64
        $region63: #{tpu_custom_call.1} parent=59 // pred_region
          %s412 = sand.u32 %s143, 1
          %s413 = scalar_lea.sflag [#allocation5], %s412
          %s414 = sand.u32 %s143, 1
          %s415 = smul.addr %s414, 16
          %s416 = scalar_lea.vmem [#allocation9], %s415
          %418 = dma.done %s413, 256
        $region64: #{tpu_custom_call.1} parent=59 // pred_fallthru
          _
      $region60: #{tpu_custom_call.1} parent=5 // pred_fallthru
        _
    $region6: #{tpu_custom_call.1} parent=1 // loop_footer
      %s23 = sadd.s32 1, %s19
    $region7: #{tpu_custom_call.1} parent=1 // loop_footer_branch
      %18 = sbr.rel target = $region3
    $region8: #{tpu_custom_call.1} parent=1 // loop_exit
      _
    %419 = vsyncpa [#allocation4], 1
    %s420 = scalar_lea.sflag [#allocation4], 1
    %421 = vsyncpa %s420, 1
    %422 = vsyncpa [#allocation7], 1
    %s423 = scalar_lea.sflag [#allocation7], 1
    %424 = vsyncpa %s423, 1
    %425 = vsyncpa [#allocation5], 1
    %s426 = scalar_lea.sflag [#allocation5], 1
    %427 = vsyncpa %s426, 1

</llo_original>
